<compile_context>
chip_gen: v7x
topology: tpu7x:2x2x1
jax: 0.10.0
libtpu: 0.0.40
codegen_flags: <defaults>
</compile_context>

<pallas_src>
import functools

import jax
import jax.numpy as jnp
from jax.experimental import pallas as pl
from jax.experimental.pallas import tpu as pltpu


_LANE = 128
_BLOCK_BYTES = 4 * 1024 * 1024        # per-operand block budget (safe v5e/v6e/v7x)
_MIN_BLOCK_BYTES = 512 * 1024         # don't fragment small problems below this
_VMEM_LIMIT = 32 * 1024 * 1024        # <= scoped VMEM on all generations
_MIN_GRID_STEPS = 8                   # keep both v7x TensorCores pipelined


def _copy_kernel(x_ref, o_ref):
    # Input and output blocks are the same (tr, tc) window; out-of-range rows /
    # lanes of the output array are masked by Pallas, so a straight copy is
    # correct for any truncate length.
    o_ref[...] = x_ref[...]


def _cdiv(a, b):
    return (a + b - 1) // b


def _round_up(v, m):
    return _cdiv(v, m) * m


def _truncate_2d(x2, t_flat):
    """x2: (N, L_flat) -> (N, t_flat), keeping the first t_flat lanes of each row."""
    n, l_flat = x2.shape
    itemsize = jnp.dtype(x2.dtype).itemsize
    pack = max(1, 4 // itemsize)              # sublane packing: f32=1, bf16=2, int8=4

    # ---- row (sublane) granularity: packed-tile aligned, legal for small N ----
    if n >= 8 * pack:
        row_gran = 8 * pack
    elif n >= 8:
        row_gran = 8
    else:
        row_gran = n                           # block row dim == full extent -> legal

    # ---- column (lane) tile: multiple of 128, covering only the kept prefix ----
    t_pad = _round_up(t_flat, _LANE)           # never read past round_up(T*D, 128)
    max_tc = max(_LANE, (_BLOCK_BYTES // (row_gran * itemsize)) // _LANE * _LANE)
    tc = min(t_pad, max_tc)

    # ---- row tile: multiple of row_gran, within the per-operand byte budget ----
    max_tr = max(row_gran, (_BLOCK_BYTES // (tc * itemsize)) // row_gran * row_gran)
    tr = min(_round_up(n, row_gran), max_tr)

    # Guarantee enough grid steps for v7x's two TensorCores to pipeline, but
    # only when blocks stay big enough that per-step overhead is amortized.
    while (_cdiv(n, tr) * _cdiv(t_flat, tc) < _MIN_GRID_STEPS
           and tr >= 2 * row_gran
           and tr * tc * itemsize >= 2 * _MIN_BLOCK_BYTES):
        tr = max(row_gran, (tr // 2) // row_gran * row_gran)

    grid = (_cdiv(n, tr), _cdiv(t_flat, tc))

    return pl.pallas_call(
        _copy_kernel,
        out_shape=jax.ShapeDtypeStruct((n, t_flat), x2.dtype),
        grid=grid,
        in_specs=[pl.BlockSpec((tr, tc), lambda i, j: (i, j))],
        out_specs=pl.BlockSpec((tr, tc), lambda i, j: (i, j)),
        compiler_params=pltpu.CompilerParams(
            dimension_semantics=("parallel", "parallel"),
            vmem_limit_bytes=_VMEM_LIMIT,
        ),
    )(x2)


def truncate(x, truncate_length):
    """Pallas equivalent of TruncateModule.forward: x[:, :, :truncate_length]."""
    t = int(truncate_length)
    shape = x.shape
    assert x.ndim >= 3, "TruncateModule expects at least a 3-D input"
    assert 0 < t <= shape[2], "truncate_length out of range"

    lead = shape[0] * shape[1]
    l = shape[2]
    tail = 1
    for s in shape[3:]:
        tail *= s

    # The kept region x[:, :, :t] is a contiguous prefix of each flattened
    # (L*tail)-wide row, so the whole op is a 2-D lane-prefix copy.
    x2 = x.reshape(lead, l * tail)
    out2 = _truncate_2d(x2, t * tail)
    return out2.reshape(shape[0], shape[1], t, *shape[3:])


# ---------------------------------- main ------------------------------------ #

if __name__ == "__main__":
    key = jax.random.PRNGKey(0)
    k1, k2, k3 = jax.random.split(key, 3)

    # 4-D: (batch=2, channels=4, seq=16, hidden=32), truncate seq dim -> 8.
    x4 = jax.random.normal(k1, (2, 4, 16, 32), jnp.float32)
    t4 = 8
    out4 = jax.jit(functools.partial(truncate, truncate_length=t4))(x4)
    jax.block_until_ready(out4)
    assert out4.shape == (2, 4, t4, 32), out4.shape
    assert bool(jnp.array_equal(out4, x4[:, :, :t4]))

    # 4-D with a non-aligned truncate length (exercises masked edge block).
    t4b = 11
    out4b = jax.jit(functools.partial(truncate, truncate_length=t4b))(x4)
    jax.block_until_ready(out4b)
    assert out4b.shape == (2, 4, t4b, 32), out4b.shape
    assert bool(jnp.array_equal(out4b, x4[:, :, :t4b]))

    # 4-D bfloat16 (exercises dtype-aware packed-sublane tiling).
    x4b = jax.random.normal(k3, (2, 4, 16, 32), jnp.bfloat16)
    out4c = jax.jit(functools.partial(truncate, truncate_length=t4b))(x4b)
    jax.block_until_ready(out4c)
    assert out4c.shape == (2, 4, t4b, 32), out4c.shape
    assert bool(jnp.array_equal(out4c, x4b[:, :, :t4b]))

    # 3-D: (batch=2, d_model=32, length=16), truncate the last dim -> 10.
    x3 = jax.random.normal(k2, (2, 32, 16), jnp.float32)
    t3 = 10
    out3 = jax.jit(functools.partial(truncate, truncate_length=t3))(x3)
    jax.block_until_ready(out3)
    assert out3.shape == (2, 32, t3), out3.shape
    assert bool(jnp.array_equal(out3, x3[:, :, :t3]))

    print("KERNEL_OK")
</pallas_src>

<mosaic_0001>
module attributes {stable_mosaic.version = 11 : i64} {
  func.func @_copy_kernel(%arg0: i32, %arg1: i32, %arg2: memref<8x256xf32, #tpu.memory_space<vmem>>, %arg3: memref<8x256xf32, #tpu.memory_space<vmem>>) attributes {dimension_semantics = [#tpu.dimension_semantics<parallel>, #tpu.dimension_semantics<parallel>], iteration_bounds = array<i64: 1, 1>, scalar_prefetch = 0 : i64, scratch_operands = 0 : i64, tpu.core_type = #tpu.core_type<tc>, window_params = [{transform_indices = @transform_0, window_bounds = array<i64: 8, 256>}, {transform_indices = @transform_1, window_bounds = array<i64: 8, 256>}]} {
    %c0 = arith.constant 0 : index
    %c0_0 = arith.constant 0 : index
    %0 = vector.load %arg2[%c0, %c0_0] : memref<8x256xf32, #tpu.memory_space<vmem>>, vector<8x256xf32>
    %c0_1 = arith.constant 0 : index
    %c0_2 = arith.constant 0 : index
    %1 = vector.load %arg3[%c0_1, %c0_2] : memref<8x256xf32, #tpu.memory_space<vmem>>, vector<8x256xf32>
    tpu.vector_store %arg3[%c0_1, %c0_2], %0 {strides = array<i32>} : memref<8x256xf32, #tpu.memory_space<vmem>>, vector<8x256xf32>,
    return
  }
  func.func @transform_0(%arg0: i32, %arg1: i32) -> (i32, i32) {
    %c0_i32 = arith.constant 0 : i32
    return %arg0, %arg1 : i32, i32
  }
  func.func @transform_1(%arg0: i32, %arg1: i32) -> (i32, i32) {
    %c0_i32 = arith.constant 0 : i32
    return %arg0, %arg1 : i32, i32
  }
}

</mosaic_0001>

<llo_original>
// kernel: truncate.1
$region0: #{truncate.1}
  #allocation0 [shape = 'u32[]', space=smem, size = 0x4, offset = 0x4, fixed_abs, tag = 'smem constant byte address 0x4 - core index']
  #allocation1 [shape = 'u32[144,128]{1,0:T(1,128)}', space=vmem, size = 0x12000, scoped, tag = 'internal scratch']
  %s0 = inlined_call_operand.vmem [shape: f32[8,512], index: 0, kind: input, shape index: {}]
  %s1 = inlined_call_operand.vmem [shape: f32[8,256], index: 1, kind: output, shape index: {}]
  %s2 = sld [smem:[#allocation0]]
  $region14: #{truncate.1} parent=0
    _
  %s4 = ssub.s32 1, %s2
  %s5 = scalar_select 0, %s4, %s2
  // Predicated region
  $region2: #{truncate.1} parent=0 // pred_check
    _
  $region3: #{truncate.1} parent=0 // pred_check_branch
    %7 = sbr.rel (0) target = $region5
  $region4: #{truncate.1} parent=0 // pred_region
    _
  $region5: #{truncate.1} parent=0 // pred_fallthru
    _
  %v8 = vld [vmem:[%s0] sm:$0xff]
  %v9 = vld [vmem:[%s0 + $0x8] sm:$0xff]
  %10 = vst [vmem:[%s1] sm:$0xff] %v8
  %11 = vst [vmem:[%s1 + $0x8] sm:$0xff] %v9
  // Predicated region
  $region6: #{truncate.1} parent=0 // pred_check
    _
  $region7: #{truncate.1} parent=0 // pred_check_branch
    %13 = sbr.rel (0) target = $region9
  $region8: #{truncate.1} parent=0 // pred_region
    _
  $region9: #{truncate.1} parent=0 // pred_fallthru
    _
  // Predicated region
  $region10: #{truncate.1} parent=0 // pred_check
    _
  $region11: #{truncate.1} parent=0 // pred_check_branch
    %15 = sbr.rel (0) target = $region13
  $region12: #{truncate.1} parent=0 // pred_region
    _
  $region13: #{truncate.1} parent=0 // pred_fallthru
    _

</llo_original>
